<compile_context>
chip_gen: v7x
topology: tpu7x:2x2x1
jax: 0.10.0
libtpu: 0.0.40
codegen_flags: <defaults>
</compile_context>

<pallas_src>
import math

import jax
import jax.numpy as jnp
from jax.experimental import pallas as pl
from jax.experimental.pallas import tpu as pltpu


def _round_up(x, m):
    return ((x + m - 1) // m) * m


def _tpu_info():
    """Best-effort (VMEM bytes, #TensorCores/chip); conservative fallbacks."""
    vmem = 64 * 1024 * 1024   # conservative (v7x per-TC VMEM)
    num_tc = 1
    try:
        info = pltpu.get_tpu_info()
        vmem = int(getattr(info, "vmem_capacity_bytes", vmem))
        num_tc = int(getattr(info, "num_tensorcores",
                             getattr(info, "tensorcores_per_chip", num_tc)))
    except Exception:
        pass
    try:
        kind = (getattr(jax.devices()[0], "device_kind", "") or "").lower()
        if "v7" in kind:
            num_tc = max(num_tc, 2)
    except Exception:
        pass
    return vmem, num_tc


def mlp_kernel(x_ref, w1_ref, b1_ref, w3_ref, b3_ref, o_ref):
    # x_ref : (tb, input_dim)      batch tile, kept in the caller's dtype
    # w1_ref: (input_dim, midnum)  resident, compute dtype
    # b1_ref: (1, midnum)          f32
    # w3_ref: (midnum, n_pad)      resident, compute dtype (n_pad = 128-lane pad)
    # b3_ref: (1, n_pad)           f32
    # o_ref : (tb, n_pad)          lane-dense output slab (compute dtype on bf16 path)
    xt = x_ref[...].astype(w1_ref.dtype)            # cast in VMEM (VPU has slack)
    h = jnp.dot(xt, w1_ref[...], preferred_element_type=jnp.float32)
    h = jnp.maximum(h + b1_ref[...], 0.0)           # bias + ReLU in f32
    h = h.astype(w3_ref.dtype)                      # feed MXU in compute dtype
    out = jnp.dot(h, w3_ref[...], preferred_element_type=jnp.float32) + b3_ref[...]
    o_ref[...] = out.astype(o_ref.dtype)


def mlps_forward(x, w1, b1, w3, b3, *, tb=4096, compute_dtype=jnp.bfloat16):
    """Pallas implementation of MLPs.forward (mlp1 -> relu -> mlp3).

    x : [B, input_dim]; w1: [input_dim, midnum]; b1: [1, midnum];
    w3: [midnum, class_num]; b3: [1, class_num].
    compute_dtype: dtype fed to the MXU (bf16 default; pass jnp.float32 or None
    for full-precision weights). Accumulation, bias add and ReLU stay f32.
    NOTE: on the bf16 path both W1 and W3 are reduced to bf16 precision (not
    just activations); accumulation remains f32.
    """
    B, input_dim = x.shape
    midnum = w1.shape[1]
    class_num = w3.shape[1]

    cdt = jnp.dtype(compute_dtype) if compute_dtype is not None else jnp.dtype(x.dtype)
    cbytes = cdt.itemsize
    xbytes = jnp.dtype(x.dtype).itemsize

    # ---- lane-dense output: pad N up to a multiple of 128 lanes -------------
    n_pad = max(128, _round_up(class_num, 128))
    if n_pad != class_num:
        w3 = jnp.pad(w3, ((0, 0), (0, n_pad - class_num)))
        b3 = jnp.pad(b3, ((0, 0), (0, n_pad - class_num)))

    # Output slab dtype: compute dtype on the bf16 path (halves writeback).
    slab_dtype = cdt if cdt == jnp.dtype(jnp.bfloat16) else jnp.dtype(x.dtype)
    obytes = slab_dtype.itemsize

    sub = 16 if (obytes == 2 or xbytes == 2) else 8   # sublane packing of tiles

    # ---- VMEM budget / per-generation tile cap ------------------------------
    phys_vmem, num_tc = _tpu_info()
    vmem_budget = (phys_vmem * 3) // 4                # leave compiler headroom

    resident = (input_dim * midnum * cbytes + midnum * 4
                + midnum * n_pad * cbytes + n_pad * 4)
    per_row = (2 * input_dim * xbytes                 # double-buffered x tile
               + 2 * n_pad * obytes                   # double-buffered out tile
               + midnum * (4 + cbytes)                # f32 h + compute-dtype copy
               + input_dim * cbytes                   # in-kernel x cast copy
               + n_pad * 4)                           # f32 acc of 2nd matmul
    avail = max(vmem_budget - resident - (2 << 20), per_row * sub)
    tb_vmem_cap = max(sub, (avail // per_row) // sub * sub)

    # ---- batch tile (no wrapper padding; ragged last block is masked) -------
    tb_eff = min(max(int(tb), sub), tb_vmem_cap, _round_up(B, sub))
    tb_eff = max(sub, (tb_eff // sub) * sub)

    # v7x only (>= 2 TensorCores): make sure both cores get work; never split
    # the single tile on v5e/v6e (pure per-step overhead there).
    if num_tc >= 2 and B >= 2 * 256:
        if tb_eff >= B:
            tb_eff = _round_up(pl.cdiv(B, 2), sub)
        else:
            steps = pl.cdiv(B, tb_eff)
            if steps % 2 == 1 and pl.cdiv(B, steps + 1) >= 256:
                tb_eff = _round_up(pl.cdiv(B, steps + 1), sub)

    grid = (pl.cdiv(B, tb_eff),)

    # ---- dtype handling: only the tiny resident weights/biases are pre-cast -
    w1_c = w1.astype(cdt)
    w3_c = w3.astype(cdt)
    b1_f = b1.astype(jnp.float32)
    b3_f = b3.astype(jnp.float32)

    flops = 2 * B * (input_dim * midnum + midnum * n_pad)
    bytes_accessed = (B * input_dim * xbytes + B * n_pad * obytes
                      + input_dim * midnum * cbytes + midnum * n_pad * cbytes
                      + (midnum + n_pad) * 4)
    cost = pl.CostEstimate(flops=flops, transcendentals=0,
                           bytes_accessed=bytes_accessed)

    # Constant-index (resident) blocks: a second pipeline buffer is dead VMEM.
    resident_mode = dict(pipeline_mode=pl.Buffered(1))

    out = pl.pallas_call(
        mlp_kernel,
        out_shape=jax.ShapeDtypeStruct((B, n_pad), slab_dtype),
        grid_spec=pltpu.PrefetchScalarGridSpec(
            num_scalar_prefetch=0,
            grid=grid,
            in_specs=[
                pl.BlockSpec((tb_eff, input_dim), lambda i: (i, 0)),              # x tile
                pl.BlockSpec((input_dim, midnum), lambda i: (0, 0), **resident_mode),  # W1
                pl.BlockSpec((1, midnum), lambda i: (0, 0), **resident_mode),          # b1
                pl.BlockSpec((midnum, n_pad), lambda i: (0, 0), **resident_mode),      # W3
                pl.BlockSpec((1, n_pad), lambda i: (0, 0), **resident_mode),           # b3
            ],
            out_specs=pl.BlockSpec((tb_eff, n_pad), lambda i: (i, 0)),
        ),
        compiler_params=pltpu.CompilerParams(
            dimension_semantics=("parallel",),
            vmem_limit_bytes=int(vmem_budget),
        ),
        cost_estimate=cost,
    )(x, w1_c, b1_f, w3_c, b3_f)

    # Slice off the lane padding (and any ragged rows never exist in out_shape),
    # cast the tiny logits back to the caller's dtype.
    return out[:B, :class_num].astype(x.dtype)


def init_linear_params(key, in_features, out_features, dtype=jnp.float32):
    """Deterministic init mimicking torch.nn.Linear (uniform +/- 1/sqrt(fan_in)).

    Returns weight as [in_features, out_features] (transposed vs PyTorch) and
    bias as [1, out_features].
    """
    kw, kb = jax.random.split(key)
    bound = 1.0 / math.sqrt(in_features)
    w = jax.random.uniform(kw, (in_features, out_features), dtype,
                           minval=-bound, maxval=bound)
    b = jax.random.uniform(kb, (1, out_features), dtype,
                           minval=-bound, maxval=bound)
    return w, b


if __name__ == "__main__":
    # Small, module-consistent shapes (class_num=2, midnum=256).
    batch = 8
    input_dim = 128
    midnum = 256
    class_num = 2

    key = jax.random.PRNGKey(0)
    kx, k1, k2, k3 = jax.random.split(key, 4)

    x = jax.random.normal(kx, (batch, input_dim), jnp.float32)
    w1, b1 = init_linear_params(k1, input_dim, midnum)
    # mlp2 exists in __init__ but is never used in forward; built only to
    # mirror the module's parameter set (kept out of the kernel on purpose).
    w2, b2 = init_linear_params(k2, midnum, midnum)
    w3, b3 = init_linear_params(k3, midnum, class_num)

    # Pure-JAX reference.
    ref = jnp.maximum(x @ w1 + b1, 0.0) @ w3 + b3

    # f32 compute path (exact-ish).
    out_f32 = jax.block_until_ready(
        mlps_forward(x, w1, b1, w3, b3, compute_dtype=jnp.float32))
    assert out_f32.shape == (batch, class_num)
    assert jnp.allclose(out_f32, ref, atol=1e-5, rtol=1e-5), "f32 mismatch vs reference"

    # Default bf16 MXU path (f32 accumulate); also exercises a ragged block
    # (tb_eff=16 > batch=8) without any wrapper-side padding.
    out_bf16 = jax.block_until_ready(mlps_forward(x, w1, b1, w3, b3))
    assert out_bf16.shape == (batch, class_num)
    assert out_bf16.dtype == x.dtype
    assert jnp.allclose(out_bf16, ref, atol=3e-2, rtol=3e-2), "bf16 mismatch vs reference"

    # Multi-step grid with a ragged final block: B=200, tb=64 -> 4 steps,
    # last step covers only 8 valid rows.
    B2 = 200
    x2 = jax.random.normal(kx, (B2, input_dim), jnp.float32)
    ref2 = jnp.maximum(x2 @ w1 + b1, 0.0) @ w3 + b3
    out2 = jax.block_until_ready(mlps_forward(x2, w1, b1, w3, b3, tb=64))
    assert out2.shape == (B2, class_num)
    assert jnp.allclose(out2, ref2, atol=3e-2, rtol=3e-2), "ragged-grid mismatch vs reference"

    print("KERNEL_OK")
</pallas_src>

<mosaic_0001>
module attributes {stable_mosaic.version = 11 : i64} {
  func.func @mlp_kernel(%arg0: i32, %arg1: memref<8x128xf32, #tpu.memory_space<vmem>>, %arg2: memref<128x256xf32, #tpu.memory_space<vmem>>, %arg3: memref<1x256xf32, #tpu.memory_space<vmem>>, %arg4: memref<256x128xf32, #tpu.memory_space<vmem>>, %arg5: memref<1x128xf32, #tpu.memory_space<vmem>>, %arg6: memref<8x128xf32, #tpu.memory_space<vmem>>) attributes {dimension_semantics = [#tpu.dimension_semantics<parallel>], iteration_bounds = array<i64: 1>, scalar_prefetch = 0 : i64, scratch_operands = 0 : i64, tpu.core_type = #tpu.core_type<tc>, window_params = [{transform_indices = @transform_0, window_bounds = array<i64: 8, 128>}, {pipeline_mode = #tpu.pipeline_mode<synchronous>, transform_indices = @transform_1, window_bounds = array<i64: 128, 256>}, {pipeline_mode = #tpu.pipeline_mode<synchronous>, transform_indices = @transform_2, window_bounds = array<i64: 1, 256>}, {pipeline_mode = #tpu.pipeline_mode<synchronous>, transform_indices = @transform_3, window_bounds = array<i64: 256, 128>}, {pipeline_mode = #tpu.pipeline_mode<synchronous>, transform_indices = @transform_4, window_bounds = array<i64: 1, 128>}, {transform_indices = @transform_5, window_bounds = array<i64: 8, 128>}]} {
    %c0 = arith.constant 0 : index
    %c0_0 = arith.constant 0 : index
    %0 = vector.load %arg1[%c0, %c0_0] : memref<8x128xf32, #tpu.memory_space<vmem>>, vector<8x128xf32>
    %c0_1 = arith.constant 0 : index
    %c0_2 = arith.constant 0 : index
    %1 = vector.load %arg2[%c0_1, %c0_2] : memref<128x256xf32, #tpu.memory_space<vmem>>, vector<128x256xf32>
    %cst = arith.constant dense<0.000000e+00> : vector<8x256xf32>
    %2 = tpu.matmul %0, %1, %cst {dimension_numbers = #tpu.dot_dimension_numbers<[1], [0], [0], [1], [0, 0, 1, 1], [], []>} : vector<8x128xf32>, vector<128x256xf32>, vector<8x256xf32> -> vector<8x256xf32>
    %c0_3 = arith.constant 0 : index
    %c0_4 = arith.constant 0 : index
    %3 = vector.load %arg3[%c0_3, %c0_4] : memref<1x256xf32, #tpu.memory_space<vmem>>, vector<1x256xf32>
    %4 = vector.broadcast %3 : vector<1x256xf32> to vector<8x256xf32>
    %5 = arith.addf %2, %4 : vector<8x256xf32>
    %cst_5 = arith.constant 0.000000e+00 : f32
    %6 = vector.broadcast %cst_5 : f32 to vector<8x256xf32>
    %7 = arith.maximumf %5, %6 : vector<8x256xf32>
    %c0_6 = arith.constant 0 : index
    %c0_7 = arith.constant 0 : index
    %8 = vector.load %arg4[%c0_6, %c0_7] : memref<256x128xf32, #tpu.memory_space<vmem>>, vector<256x128xf32>
    %cst_8 = arith.constant dense<0.000000e+00> : vector<8x128xf32>
    %9 = tpu.matmul %7, %8, %cst_8 {dimension_numbers = #tpu.dot_dimension_numbers<[1], [0], [0], [1], [0, 0, 1, 1], [], []>} : vector<8x256xf32>, vector<256x128xf32>, vector<8x128xf32> -> vector<8x128xf32>
    %c0_9 = arith.constant 0 : index
    %c0_10 = arith.constant 0 : index
    %10 = vector.load %arg5[%c0_9, %c0_10] : memref<1x128xf32, #tpu.memory_space<vmem>>, vector<1x128xf32>
    %11 = vector.broadcast %10 : vector<1x128xf32> to vector<8x128xf32>
    %12 = arith.addf %9, %11 : vector<8x128xf32>
    %c0_11 = arith.constant 0 : index
    %c0_12 = arith.constant 0 : index
    %13 = vector.load %arg6[%c0_11, %c0_12] : memref<8x128xf32, #tpu.memory_space<vmem>>, vector<8x128xf32>
    tpu.vector_store %arg6[%c0_11, %c0_12], %12 {strides = array<i32>} : memref<8x128xf32, #tpu.memory_space<vmem>>, vector<8x128xf32>,
    return
  }
  func.func @transform_0(%arg0: i32) -> (i32, i32) {
    %c0_i32 = arith.constant 0 : i32
    %c0_i32_0 = arith.constant 0 : i32
    return %arg0, %c0_i32 : i32, i32
  }
  func.func @transform_1(%arg0: i32) -> (i32, i32) {
    %c0_i32 = arith.constant 0 : i32
    %c0_i32_0 = arith.constant 0 : i32
    %c0_i32_1 = arith.constant 0 : i32
    return %c0_i32, %c0_i32_0 : i32, i32
  }
  func.func @transform_2(%arg0: i32) -> (i32, i32) {
    %c0_i32 = arith.constant 0 : i32
    %c0_i32_0 = arith.constant 0 : i32
    %c0_i32_1 = arith.constant 0 : i32
    return %c0_i32, %c0_i32_0 : i32, i32
  }
  func.func @transform_3(%arg0: i32) -> (i32, i32) {
    %c0_i32 = arith.constant 0 : i32
    %c0_i32_0 = arith.constant 0 : i32
    %c0_i32_1 = arith.constant 0 : i32
    return %c0_i32, %c0_i32_0 : i32, i32
  }
  func.func @transform_4(%arg0: i32) -> (i32, i32) {
    %c0_i32 = arith.constant 0 : i32
    %c0_i32_0 = arith.constant 0 : i32
    %c0_i32_1 = arith.constant 0 : i32
    return %c0_i32, %c0_i32_0 : i32, i32
  }
  func.func @transform_5(%arg0: i32) -> (i32, i32) {
    %c0_i32 = arith.constant 0 : i32
    %c0_i32_0 = arith.constant 0 : i32
    return %arg0, %c0_i32 : i32, i32
  }
}

</mosaic_0001>

<llo_original>
// kernel: tpu_custom_call.1
$region0: #{tpu_custom_call.1}
  #allocation0 [shape = 'u32[]', space=smem, size = 0x4, offset = 0x4, fixed_abs, tag = 'smem constant byte address 0x4 - core index']
  #allocation1 [shape = 'u32[144,128]{1,0:T(1,128)}', space=vmem, size = 0x12000, scoped, tag = 'internal scratch']
  %s0 = inlined_call_operand.hbm [shape: f32[8,128], index: 0, kind: input, shape index: {}]
  %s1 = inlined_call_operand.hbm [shape: f32[128,256], index: 1, kind: input, shape index: {}]
  %s2 = inlined_call_operand.vmem [shape: f32[1,256], index: 2, kind: input, shape index: {}]
  %s3 = inlined_call_operand.hbm [shape: f32[256,128], index: 3, kind: input, shape index: {}]
  %s4 = inlined_call_operand.vmem [shape: f32[1,128], index: 4, kind: input, shape index: {}]
  %s5 = inlined_call_operand.hbm [shape: f32[8,128], index: 5, kind: output, shape index: {}]
  %s6 = sld [smem:[#allocation0]]
  $region42: #{tpu_custom_call.1} parent=0
    _
  %s8 = ssub.s32 1, %s6
  %s9 = scalar_select 0, %s8, %s6
  $region1: #{tpu_custom_call.1} parent=0
    #allocation2 [shape = 'u8[4096]{0}', space=vmem, size = 0x1000, scoped, tag = 'input window, operand 0, single buffered']
    #allocation3 [shape = 's32[1]{0}', space=sflag, size = 0x4, scoped, tag = 'scoped memory for tpu_custom_call.1']
    #allocation4 [shape = 's32[1]{0}', space=sflag, size = 0x4, scoped, tag = 'scoped memory for tpu_custom_call.1']
    #allocation5 [shape = 'u8[131072]{0}', space=vmem, size = 0x20000, scoped, tag = 'input window, operand 1, single buffered']
    #allocation6 [shape = 's32[1]{0}', space=sflag, size = 0x4, scoped, tag = 'scoped memory for tpu_custom_call.1']
    #allocation7 [shape = 'u8[131072]{0}', space=vmem, size = 0x20000, scoped, tag = 'input window, operand 3, single buffered']
    #allocation8 [shape = 'u8[4096]{0}', space=vmem, size = 0x1000, scoped, tag = 'output window, operand 0, single buffered']
    %10 = vsyncpa [#allocation3], 0
    %11 = vsyncpa [#allocation6], 0
    %12 = vsyncpa [#allocation4], 0
    // Predicated region
    $region2: #{tpu_custom_call.1} parent=1 // pred_check
      _
    $region3: #{tpu_custom_call.1} parent=1 // pred_check_branch
      %14 = sbr.rel (0) target = $region5
    $region4: #{tpu_custom_call.1} parent=1 // pred_region
      %s16 = ssub.s32 128, 128
      %17 = vsyncadd [#allocation3], %s16
      %s19 = sshll.u32 [#allocation2], 4
      %s20 = int_to_ptr.vmem [resolvable:$true] %s19
      %22 = dma.hbm_to_vmem [thread:$0]  %s0, 128, %s20, [#allocation3]
    $region5: #{tpu_custom_call.1} parent=1 // pred_fallthru
      _
    // Predicated region
    $region6: #{tpu_custom_call.1} parent=1 // pred_check
      _
    $region7: #{tpu_custom_call.1} parent=1 // pred_check_branch
      %24 = sbr.rel (0) target = $region9
    $region8: #{tpu_custom_call.1} parent=1 // pred_region
      %s26 = ssub.s32 4096, 4096
      %27 = vsyncadd [#allocation6], %s26
      %s28 = sshll.u32 [#allocation5], 4
      %s29 = int_to_ptr.vmem [resolvable:$true] %s28
      %34 = dma.hbm_to_vmem [thread:$0]  %s1, 4096, %s29, [#allocation6], 256, 256, 16
    $region9: #{tpu_custom_call.1} parent=1 // pred_fallthru
      _
    // Predicated region
    $region10: #{tpu_custom_call.1} parent=1 // pred_check
      _
    $region11: #{tpu_custom_call.1} parent=1 // pred_check_branch
      %36 = sbr.rel (0) target = $region13
    $region12: #{tpu_custom_call.1} parent=1 // pred_region
      _
    $region13: #{tpu_custom_call.1} parent=1 // pred_fallthru
      _
    // Predicated region
    $region14: #{tpu_custom_call.1} parent=1 // pred_check
      _
    $region15: #{tpu_custom_call.1} parent=1 // pred_check_branch
      %38 = sbr.rel (0) target = $region17
    $region16: #{tpu_custom_call.1} parent=1 // pred_region
      %s40 = ssub.s32 4096, 4096
      %41 = vsyncadd [#allocation6], %s40
      %s42 = sshll.u32 [#allocation7], 4
      %s43 = int_to_ptr.vmem [resolvable:$true] %s42
      %48 = dma.hbm_to_vmem [thread:$0]  %s3, 4096, %s43, [#allocation6], 128, 128, 8
    $region17: #{tpu_custom_call.1} parent=1 // pred_fallthru
      _
    // Predicated region
    $region18: #{tpu_custom_call.1} parent=1 // pred_check
      _
    $region19: #{tpu_custom_call.1} parent=1 // pred_check_branch
      %50 = sbr.rel (0) target = $region21
    $region20: #{tpu_custom_call.1} parent=1 // pred_region
      _
    $region21: #{tpu_custom_call.1} parent=1 // pred_fallthru
      _
    // Predicated region
    $region22: #{tpu_custom_call.1} parent=1 // pred_check
      _
    $region23: #{tpu_custom_call.1} parent=1 // pred_check_branch
      %52 = sbr.rel (0) target = $region25
    $region24: #{tpu_custom_call.1} parent=1 // pred_region
      %53 = dma.done [#allocation3], 128
    $region25: #{tpu_custom_call.1} parent=1 // pred_fallthru
      _
    // Predicated region
    $region26: #{tpu_custom_call.1} parent=1 // pred_check
      _
    $region27: #{tpu_custom_call.1} parent=1 // pred_check_branch
      %55 = sbr.rel (0) target = $region29
    $region28: #{tpu_custom_call.1} parent=1 // pred_region
      %56 = dma.done [#allocation6], 4096
    $region29: #{tpu_custom_call.1} parent=1 // pred_fallthru
      _
    // Predicated region
    $region30: #{tpu_custom_call.1} parent=1 // pred_check
      _
    $region31: #{tpu_custom_call.1} parent=1 // pred_check_branch
      %58 = sbr.rel (0) target = $region33
    $region32: #{tpu_custom_call.1} parent=1 // pred_region
      %59 = dma.done [#allocation6], 4096
    $region33: #{tpu_custom_call.1} parent=1 // pred_fallthru
      _
    %v60 = vld [vmem:[#allocation2] sm:$0xff]
    %v61 = vld [vmem:[#allocation5] sm:$0xff]
    %v62 = vld [vmem:[#allocation5 + $0x8] sm:$0xff]
    %v63 = vld [vmem:[#allocation5 + $0x10] sm:$0xff]
    %v64 = vld [vmem:[#allocation5 + $0x18] sm:$0xff]
    %v65 = vld [vmem:[#allocation5 + $0x20] sm:$0xff]
    %v66 = vld [vmem:[#allocation5 + $0x28] sm:$0xff]
    %v67 = vld [vmem:[#allocation5 + $0x30] sm:$0xff]
    %v68 = vld [vmem:[#allocation5 + $0x38] sm:$0xff]
    %v69 = vld [vmem:[#allocation5 + $0x40] sm:$0xff]
    %v70 = vld [vmem:[#allocation5 + $0x48] sm:$0xff]
    %v71 = vld [vmem:[#allocation5 + $0x50] sm:$0xff]
    %v72 = vld [vmem:[#allocation5 + $0x58] sm:$0xff]
    %v73 = vld [vmem:[#allocation5 + $0x60] sm:$0xff]
    %v74 = vld [vmem:[#allocation5 + $0x68] sm:$0xff]
    %v75 = vld [vmem:[#allocation5 + $0x70] sm:$0xff]
    %v76 = vld [vmem:[#allocation5 + $0x78] sm:$0xff]
    %v77 = vld [vmem:[#allocation5 + $0x80] sm:$0xff]
    %v78 = vld [vmem:[#allocation5 + $0x88] sm:$0xff]
    %v79 = vld [vmem:[#allocation5 + $0x90] sm:$0xff]
    %v80 = vld [vmem:[#allocation5 + $0x98] sm:$0xff]
    %v81 = vld [vmem:[#allocation5 + $0xa0] sm:$0xff]
    %v82 = vld [vmem:[#allocation5 + $0xa8] sm:$0xff]
    %v83 = vld [vmem:[#allocation5 + $0xb0] sm:$0xff]
    %v84 = vld [vmem:[#allocation5 + $0xb8] sm:$0xff]
    %v85 = vld [vmem:[#allocation5 + $0xc0] sm:$0xff]
    %v86 = vld [vmem:[#allocation5 + $0xc8] sm:$0xff]
    %v87 = vld [vmem:[#allocation5 + $0xd0] sm:$0xff]
    %v88 = vld [vmem:[#allocation5 + $0xd8] sm:$0xff]
    %v89 = vld [vmem:[#allocation5 + $0xe0] sm:$0xff]
    %v90 = vld [vmem:[#allocation5 + $0xe8] sm:$0xff]
    %v91 = vld [vmem:[#allocation5 + $0xf0] sm:$0xff]
    %v92 = vld [vmem:[#allocation5 + $0xf8] sm:$0xff]
    %v93 = vld [vmem:[%s2] sm:$0x3]
    %v95 = vlaneseq
    %v96 = vshrl.u32 %v95, 7
    %v97 = vsub.s32 0, %v96
    %v98 = vrot.slane %v93, %v97
    %v99 = vlaneseq
    %v100 = vshrl.u32 %v99, 7
    %v101 = vsub.s32 1, %v100
    %v102 = vrot.slane %v93, %v101
    %105 = vmatprep.subr.mxu0 %v62
    %106 = vmatpush1.msra.mxu0 %v61
    %107 = vmatprep.subr.mxu0 %v64
    %108 = vmatpush1.msra.mxu0 %v63
    %109 = vmatprep.subr.mxu0 %v66
    %110 = vmatpush1.msra.mxu0 %v65
    %111 = vmatprep.subr.mxu0 %v68
    %112 = vmatpush1.msra.mxu0 %v67
    %113 = vmatprep.subr.mxu0 %v70
    %114 = vmatpush1.msra.mxu0 %v69
    %115 = vmatprep.subr.mxu0 %v72
    %116 = vmatpush1.msra.mxu0 %v71
    %117 = vmatprep.subr.mxu0 %v74
    %118 = vmatpush1.msra.mxu0 %v73
    %119 = vmatprep.subr.mxu0 %v76
    %120 = vmatpush1.msra.mxu0 %v75
    %121 = vmatprep.subr.mxu0 %v78
    %122 = vmatpush1.msra.mxu0 %v77
    %123 = vmatprep.subr.mxu0 %v80
    %124 = vmatpush1.msra.mxu0 %v79
    %125 = vmatprep.subr.mxu0 %v82
    %126 = vmatpush1.msra.mxu0 %v81
    %127 = vmatprep.subr.mxu0 %v84
    %128 = vmatpush1.msra.mxu0 %v83
    %129 = vmatprep.subr.mxu0 %v86
    %130 = vmatpush1.msra.mxu0 %v85
    %131 = vmatprep.subr.mxu0 %v88
    %132 = vmatpush1.msra.mxu0 %v87
    %133 = vmatprep.subr.mxu0 %v90
    %134 = vmatpush1.msra.mxu0 %v89
    %135 = vmatprep.subr.mxu0 %v92
    %136 = vmatpush1.msra.mxu0 %v91
    %137 = vmatprep.subr.mxu0 0.0
    %138 = vmatpush1.msra.mxu0 0.0
    %139 = vmatprep.subr.mxu0 0.0
    %140 = vmatpush1.msra.mxu0 0.0
    %141 = vmatprep.subr.mxu0 0.0
    %142 = vmatpush1.msra.mxu0 0.0
    %143 = vmatprep.subr.mxu0 0.0
    %144 = vmatpush1.msra.mxu0 0.0
    %145 = vmatprep.subr.mxu0 0.0
    %146 = vmatpush1.msra.mxu0 0.0
    %147 = vmatprep.subr.mxu0 0.0
    %148 = vmatpush1.msra.mxu0 0.0
    %149 = vmatprep.subr.mxu0 0.0
    %150 = vmatpush1.msra.mxu0 0.0
    %151 = vmatprep.subr.mxu0 0.0
    %152 = vmatpush1.msra.mxu0 0.0
    %153 = vmatprep.subr.mxu0 0.0
    %154 = vmatpush1.msra.mxu0 0.0
    %155 = vmatprep.subr.mxu0 0.0
    %156 = vmatpush1.msra.mxu0 0.0
    %157 = vmatprep.subr.mxu0 0.0
    %158 = vmatpush1.msra.mxu0 0.0
    %159 = vmatprep.subr.mxu0 0.0
    %160 = vmatpush1.msra.mxu0 0.0
    %161 = vmatprep.subr.mxu0 0.0
    %162 = vmatpush1.msra.mxu0 0.0
    %163 = vmatprep.subr.mxu0 0.0
    %164 = vmatpush1.msra.mxu0 0.0
    %165 = vmatprep.subr.mxu0 0.0
    %166 = vmatpush1.msra.mxu0 0.0
    %167 = vmatprep.subr.mxu0 0.0
    %168 = vmatpush1.msra.mxu0 0.0
    %169 = vmatprep.mubr.f32.mxu0 0.0
    %170 = vmatmul.mubr.f32.gmra.mrb[0].mxu0 %v60
    %v171 = vpop.f32.mrb[0].mxu0
    %v172 = vadd.f32 %v98, %v171
    %v173 = vpop.f32.mrb[0].mxu0
    %v174 = vadd.f32 %v102, %v173
    %175 = vdwg.mxu0
    %v176 = vmax.f32 %v172, 0.0
    %v177 = vmax.f32 %v174, 0.0
    %v178 = vld [vmem:[#allocation7] sm:$0xff]
    %v179 = vld [vmem:[#allocation7 + $0x8] sm:$0xff]
    %v180 = vld [vmem:[#allocation7 + $0x10] sm:$0xff]
    %v181 = vld [vmem:[#allocation7 + $0x18] sm:$0xff]
    %v182 = vld [vmem:[#allocation7 + $0x20] sm:$0xff]
    %v183 = vld [vmem:[#allocation7 + $0x28] sm:$0xff]
    %v184 = vld [vmem:[#allocation7 + $0x30] sm:$0xff]
    %v185 = vld [vmem:[#allocation7 + $0x38] sm:$0xff]
    %v186 = vld [vmem:[#allocation7 + $0x40] sm:$0xff]
    %v187 = vld [vmem:[#allocation7 + $0x48] sm:$0xff]
    %v188 = vld [vmem:[#allocation7 + $0x50] sm:$0xff]
    %v189 = vld [vmem:[#allocation7 + $0x58] sm:$0xff]
    %v190 = vld [vmem:[#allocation7 + $0x60] sm:$0xff]
    %v191 = vld [vmem:[#allocation7 + $0x68] sm:$0xff]
    %v192 = vld [vmem:[#allocation7 + $0x70] sm:$0xff]
    %v193 = vld [vmem:[#allocation7 + $0x78] sm:$0xff]
    %v194 = vld [vmem:[#allocation7 + $0x80] sm:$0xff]
    %v195 = vld [vmem:[#allocation7 + $0x88] sm:$0xff]
    %v196 = vld [vmem:[#allocation7 + $0x90] sm:$0xff]
    %v197 = vld [vmem:[#allocation7 + $0x98] sm:$0xff]
    %v198 = vld [vmem:[#allocation7 + $0xa0] sm:$0xff]
    %v199 = vld [vmem:[#allocation7 + $0xa8] sm:$0xff]
    %v200 = vld [vmem:[#allocation7 + $0xb0] sm:$0xff]
    %v201 = vld [vmem:[#allocation7 + $0xb8] sm:$0xff]
    %v202 = vld [vmem:[#allocation7 + $0xc0] sm:$0xff]
    %v203 = vld [vmem:[#allocation7 + $0xc8] sm:$0xff]
    %v204 = vld [vmem:[#allocation7 + $0xd0] sm:$0xff]
    %v205 = vld [vmem:[#allocation7 + $0xd8] sm:$0xff]
    %v206 = vld [vmem:[#allocation7 + $0xe0] sm:$0xff]
    %v207 = vld [vmem:[#allocation7 + $0xe8] sm:$0xff]
    %v208 = vld [vmem:[#allocation7 + $0xf0] sm:$0xff]
    %v209 = vld [vmem:[#allocation7 + $0xf8] sm:$0xff]
    %v210 = vld [vmem:[%s4] sm:$0x1]
    %v212 = vlaneseq
    %v213 = vshrl.u32 %v212, 7
    %v214 = vsub.s32 0, %v213
    %v215 = vrot.slane %v210, %v214
    %217 = vmatprep.subr.mxu0 0.0
    %218 = vmatpush1.msra.mxu0 %v178
    %219 = vmatprep.subr.mxu0 0.0
    %220 = vmatpush1.msra.mxu0 %v179
    %221 = vmatprep.subr.mxu0 0.0
    %222 = vmatpush1.msra.mxu0 %v180
    %223 = vmatprep.subr.mxu0 0.0
    %224 = vmatpush1.msra.mxu0 %v181
    %225 = vmatprep.subr.mxu0 0.0
    %226 = vmatpush1.msra.mxu0 %v182
    %227 = vmatprep.subr.mxu0 0.0
    %228 = vmatpush1.msra.mxu0 %v183
    %229 = vmatprep.subr.mxu0 0.0
    %230 = vmatpush1.msra.mxu0 %v184
    %231 = vmatprep.subr.mxu0 0.0
    %232 = vmatpush1.msra.mxu0 %v185
    %233 = vmatprep.subr.mxu0 0.0
    %234 = vmatpush1.msra.mxu0 %v186
    %235 = vmatprep.subr.mxu0 0.0
    %236 = vmatpush1.msra.mxu0 %v187
    %237 = vmatprep.subr.mxu0 0.0
    %238 = vmatpush1.msra.mxu0 %v188
    %239 = vmatprep.subr.mxu0 0.0
    %240 = vmatpush1.msra.mxu0 %v189
    %241 = vmatprep.subr.mxu0 0.0
    %242 = vmatpush1.msra.mxu0 %v190
    %243 = vmatprep.subr.mxu0 0.0
    %244 = vmatpush1.msra.mxu0 %v191
    %245 = vmatprep.subr.mxu0 0.0
    %246 = vmatpush1.msra.mxu0 %v192
    %247 = vmatprep.subr.mxu0 0.0
    %248 = vmatpush1.msra.mxu0 %v193
    %249 = vmatprep.subr.mxu0 0.0
    %250 = vmatpush1.msra.mxu0 %v194
    %251 = vmatprep.subr.mxu0 0.0
    %252 = vmatpush1.msra.mxu0 %v195
    %253 = vmatprep.subr.mxu0 0.0
    %254 = vmatpush1.msra.mxu0 %v196
    %255 = vmatprep.subr.mxu0 0.0
    %256 = vmatpush1.msra.mxu0 %v197
    %257 = vmatprep.subr.mxu0 0.0
    %258 = vmatpush1.msra.mxu0 %v198
    %259 = vmatprep.subr.mxu0 0.0
    %260 = vmatpush1.msra.mxu0 %v199
    %261 = vmatprep.subr.mxu0 0.0
    %262 = vmatpush1.msra.mxu0 %v200
    %263 = vmatprep.subr.mxu0 0.0
    %264 = vmatpush1.msra.mxu0 %v201
    %265 = vmatprep.subr.mxu0 0.0
    %266 = vmatpush1.msra.mxu0 %v202
    %267 = vmatprep.subr.mxu0 0.0
    %268 = vmatpush1.msra.mxu0 %v203
    %269 = vmatprep.subr.mxu0 0.0
    %270 = vmatpush1.msra.mxu0 %v204
    %271 = vmatprep.subr.mxu0 0.0
    %272 = vmatpush1.msra.mxu0 %v205
    %273 = vmatprep.subr.mxu0 0.0
    %274 = vmatpush1.msra.mxu0 %v206
    %275 = vmatprep.subr.mxu0 0.0
    %276 = vmatpush1.msra.mxu0 %v207
    %277 = vmatprep.subr.mxu0 0.0
    %278 = vmatpush1.msra.mxu0 %v208
    %279 = vmatprep.subr.mxu0 0.0
    %280 = vmatpush1.msra.mxu0 %v209
    %281 = vmatprep.mubr.f32.mxu0 %v177
    %282 = vmatmul.mubr.f32.gmra.mrb[0].mxu0 %v176
    %v283 = vpop.f32.mrb[0].mxu0
    %v284 = vadd.f32 %v215, %v283
    %v285 = vpop.f32.mrb[0].mxu0
    %286 = vdwg.mxu0
    %287 = vst [vmem:[#allocation8] sm:$0xff] %v284
    // Predicated region
    $region34: #{tpu_custom_call.1} parent=1 // pred_check
      _
    $region35: #{tpu_custom_call.1} parent=1 // pred_check_branch
      %289 = sbr.rel (0) target = $region37
    $region36: #{tpu_custom_call.1} parent=1 // pred_region
      %s291 = ssub.s32 128, 128
      %292 = vsyncadd [#allocation4], %s291
      %s294 = sshll.u32 [#allocation8], 4
      %s295 = int_to_ptr.vmem [resolvable:$true] %s294
      %297 = dma.vmem_to_hbm [thread:$0]  %s295, 128, %s5, [#allocation4]
    $region37: #{tpu_custom_call.1} parent=1 // pred_fallthru
      _
    // Predicated region
    $region38: #{tpu_custom_call.1} parent=1 // pred_check
      _
    $region39: #{tpu_custom_call.1} parent=1 // pred_check_branch
      %299 = sbr.rel (0) target = $region41
    $region40: #{tpu_custom_call.1} parent=1 // pred_region
      %300 = dma.done [#allocation4], 128
    $region41: #{tpu_custom_call.1} parent=1 // pred_fallthru
      _
    %301 = vsyncpa [#allocation3], 1
    %302 = vsyncpa [#allocation6], 1
    %303 = vsyncpa [#allocation4], 1

</llo_original>
